<compile_context>
chip_gen: v5e
topology: v5e:2x2
jax: 0.10.0
libtpu: 0.0.40
codegen_flags: <defaults>
</compile_context>

<pallas_src>
import math

import jax
import jax.numpy as jnp
from jax.experimental import pallas as pl
from jax.experimental.pallas import tpu as pltpu


def _gumbel_quantize_kernel(z_ref, g_ref, wp_ref, bp_ref, emb_ref,
                            zq_ref, kl_ref, idx_ref):
    # z_ref  : (TM, H) f32  input activations tile
    # g_ref  : (TM, E) f32  pre-drawn Gumbel noise tile
    # wp_ref : (H,  E) f32  proj weight (transposed vs torch Linear)
    # bp_ref : (1,  E) f32  proj bias
    # emb_ref: (E,  D) f32  codebook (embed.weight)
    # zq_ref : (TM, D) f32  quantized output tile
    # kl_ref : (1, 1)  f32  per-tile KL sum (SMEM)
    # idx_ref: (1, 1, TM) i32 encoding indices (lane-dense)
    tm, _ = z_ref.shape
    e = wp_ref.shape[1]

    # logits = proj(z): f32 matmul, f32 accumulation on the MXU.
    logits = jnp.dot(z_ref[...], wp_ref[...],
                     preferred_element_type=jnp.float32) + bp_ref[...]

    # gumbel_softmax(..., hard=True) forward value: one_hot(argmax(logits + g)).
    # (/tau dropped: it does not change the argmax for tau > 0.)
    y = logits + g_ref[...]
    col = jax.lax.broadcasted_iota(jnp.int32, y.shape, 1)      # (TM, E)
    y_max = jnp.max(y, axis=-1, keepdims=True)
    # first index attaining the max (matches torch argmax tie-breaking)
    idx_col = jnp.min(jnp.where(y >= y_max, col, e), axis=-1, keepdims=True)
    one_hot = (col == idx_col).astype(jnp.float32)              # (TM, E)

    # z_q = one_hot @ embed.weight (hard straight-through forward value, exact).
    zq_ref[...] = jnp.dot(one_hot, emb_ref[...],
                          preferred_element_type=jnp.float32).astype(zq_ref.dtype)

    # KL(softmax(logits) || uniform) via log-sum-exp (no (TM,E) log, no qy tensor):
    #   kl_row = sum(ex * shift)/sum_ex - log(sum_ex) + log(E),  shift = l - max
    # TODO(synk): torch adds +1e-10 inside the log; negligible and omitted here.
    l_max = jnp.max(logits, axis=-1, keepdims=True)
    shift = logits - l_max
    ex = jnp.exp(shift)
    sum_ex = jnp.sum(ex, axis=-1, keepdims=True)
    kl_row = (jnp.sum(ex * shift, axis=-1, keepdims=True) / sum_ex
              - jnp.log(sum_ex) + math.log(e))                  # (TM, 1)
    kl_ref[0, 0] = jnp.sum(kl_row)                              # one scalar per tile

    # encoding_indices, stored lane-dense (unmasked full-width store).
    idx_ref[...] = idx_col.T.reshape(1, 1, tm)


def gumbel_quantize(z, proj_w, proj_b, embed_w, noise_key, *,
                    temperature=1.0, kl_weight=0.0005):
    """Forward of GumbelQuantize (remap=None), hard gumbel-softmax path.

    z        : (B, S, num_hiddens) float
    proj_w   : (num_hiddens, n_embed)   (torch proj.weight.T)
    proj_b   : (n_embed,)
    embed_w  : (n_embed, embedding_dim)
    Returns (z_q, loss, encoding_indices):
        (B, S, embedding_dim) f32, scalar f32, (B, S) int32.
    """
    del temperature  # hard forward value is tau-invariant; no soft path here.
    B, S, H = z.shape
    Hw, E = proj_w.shape
    Ee, D = embed_w.shape
    assert Hw == H and Ee == E

    N = B * S
    TM = N if N <= 512 else 512       # row tile; N assumed divisible by TM
    assert N % TM == 0
    num_tiles = N // TM

    z_flat = z.reshape(N, H).astype(jnp.float32)
    wp = proj_w.astype(jnp.float32)
    bias2d = proj_b.reshape(1, E).astype(jnp.float32)
    emb = embed_w.astype(jnp.float32)

    # Gumbel noise drawn outside the kernel (pltpu.prng_* does not lower on the
    # interpret/CPU path); streamed per row-tile.
    gumbel = jax.random.gumbel(noise_key, (N, E), dtype=jnp.float32)

    # Rough VMEM budget (double-buffered streams + logits/noise working set),
    # capped at 64 MiB so the budget also holds on v7x.
    est = (2 * TM * H * 4 + 2 * TM * E * 4 + 2 * H * E * 4 + 2 * E * 4
           + 2 * E * D * 4 + 2 * TM * D * 4 + 2 * TM * 4 + 6 * TM * E * 4)
    vmem_limit = int(min(max(32 * 1024 * 1024, est * 5 // 4), 64 * 1024 * 1024))

    zq, kl_tiles, idx = pl.pallas_call(
        _gumbel_quantize_kernel,
        out_shape=(
            jax.ShapeDtypeStruct((N, D), jnp.float32),
            jax.ShapeDtypeStruct((num_tiles, 1), jnp.float32),
            jax.ShapeDtypeStruct((num_tiles, 1, TM), jnp.int32),
        ),
        grid_spec=pltpu.PrefetchScalarGridSpec(
            num_scalar_prefetch=0,
            grid=(num_tiles,),
            in_specs=[
                pl.BlockSpec((TM, H), lambda i: (i, 0)),   # z rows
                pl.BlockSpec((TM, E), lambda i: (i, 0)),   # gumbel noise rows
                pl.BlockSpec((H, E),  lambda i: (0, 0)),   # proj weight
                pl.BlockSpec((1, E),  lambda i: (0, 0)),   # proj bias
                pl.BlockSpec((E, D),  lambda i: (0, 0)),   # codebook
            ],
            out_specs=(
                pl.BlockSpec((TM, D), lambda i: (i, 0)),
                pl.BlockSpec((1, 1), lambda i: (i, 0),
                             memory_space=pltpu.MemorySpace.SMEM),
                pl.BlockSpec((1, 1, TM), lambda i: (i, 0, 0)),
            ),
        ),
        compiler_params=pltpu.CompilerParams(
            dimension_semantics=("parallel",),   # row tiles shard across TCs
            vmem_limit_bytes=vmem_limit,
        ),
    )(z_flat, gumbel, wp, bias2d, emb)

    loss = kl_weight * (jnp.sum(kl_tiles) / N)
    z_q = zq.reshape(B, S, D)
    # TODO(synk): torch returns int64 indices; int32 used here (TPU-native).
    encoding_indices = idx.reshape(B, S)
    return z_q, loss, encoding_indices


if __name__ == "__main__":
    # Small shapes consistent with the module's forward:
    B, S = 2, 64
    num_hiddens, embedding_dim, n_embed = 32, 16, 128

    root = jax.random.PRNGKey(0)
    k_z, k_w, k_b, k_e, k_g = jax.random.split(root, 5)

    # Deterministic synthetic parameters (shapes from __init__).
    z = jax.random.normal(k_z, (B, S, num_hiddens), dtype=jnp.float32)
    bound = 1.0 / jnp.sqrt(num_hiddens)
    proj_w = jax.random.uniform(k_w, (num_hiddens, n_embed),
                                minval=-bound, maxval=bound, dtype=jnp.float32)
    proj_b = jax.random.uniform(k_b, (n_embed,),
                                minval=-bound, maxval=bound, dtype=jnp.float32)
    embed_w = jax.random.normal(k_e, (n_embed, embedding_dim), dtype=jnp.float32)

    z_q, loss, enc_idx = gumbel_quantize(z, proj_w, proj_b, embed_w, k_g,
                                         temperature=1.0, kl_weight=0.0005)
    jax.block_until_ready((z_q, loss, enc_idx))

    assert z_q.shape == (B, S, embedding_dim)
    assert loss.shape == ()
    assert enc_idx.shape == (B, S)
    assert bool(jnp.all(jnp.isfinite(z_q)))
    assert bool(jnp.isfinite(loss))
    assert bool(jnp.all((enc_idx >= 0) & (enc_idx < n_embed)))
    print("KERNEL_OK")
</pallas_src>

<mosaic_0001>
module attributes {stable_mosaic.version = 11 : i64} {
  func.func @_gumbel_quantize_kernel(%arg0: i32, %arg1: memref<128x32xf32, #tpu.memory_space<vmem>>, %arg2: memref<128x128xf32, #tpu.memory_space<vmem>>, %arg3: memref<32x128xf32, #tpu.memory_space<vmem>>, %arg4: memref<1x128xf32, #tpu.memory_space<vmem>>, %arg5: memref<128x16xf32, #tpu.memory_space<vmem>>, %arg6: memref<128x16xf32, #tpu.memory_space<vmem>>, %arg7: memref<1x1xf32, #tpu.memory_space<smem>>, %arg8: memref<1x1x128xi32, #tpu.memory_space<vmem>>) attributes {dimension_semantics = [#tpu.dimension_semantics<parallel>], iteration_bounds = array<i64: 1>, scalar_prefetch = 0 : i64, scratch_operands = 0 : i64, tpu.core_type = #tpu.core_type<tc>, window_params = [{transform_indices = @transform_0, window_bounds = array<i64: 128, 32>}, {transform_indices = @transform_1, window_bounds = array<i64: 128, 128>}, {pipeline_mode = #tpu.pipeline_mode<synchronous>, transform_indices = @transform_2, window_bounds = array<i64: 32, 128>}, {pipeline_mode = #tpu.pipeline_mode<synchronous>, transform_indices = @transform_3, window_bounds = array<i64: 1, 128>}, {pipeline_mode = #tpu.pipeline_mode<synchronous>, transform_indices = @transform_4, window_bounds = array<i64: 128, 16>}, {transform_indices = @transform_5, window_bounds = array<i64: 128, 16>}, {transform_indices = @transform_6, window_bounds = array<i64: 1, 1>}, {transform_indices = @transform_7, window_bounds = array<i64: 1, 1, 128>}]} {
    %c0 = arith.constant 0 : index
    %c0_0 = arith.constant 0 : index
    %0 = vector.load %arg1[%c0, %c0_0] : memref<128x32xf32, #tpu.memory_space<vmem>>, vector<128x32xf32>
    %c0_1 = arith.constant 0 : index
    %c0_2 = arith.constant 0 : index
    %1 = vector.load %arg3[%c0_1, %c0_2] : memref<32x128xf32, #tpu.memory_space<vmem>>, vector<32x128xf32>
    %cst = arith.constant dense<0.000000e+00> : vector<128x128xf32>
    %2 = tpu.matmul %0, %1, %cst {dimension_numbers = #tpu.dot_dimension_numbers<[1], [0], [0], [1], [0, 0, 1, 1], [], []>} : vector<128x32xf32>, vector<32x128xf32>, vector<128x128xf32> -> vector<128x128xf32>
    %c0_3 = arith.constant 0 : index
    %c0_4 = arith.constant 0 : index
    %3 = vector.load %arg4[%c0_3, %c0_4] : memref<1x128xf32, #tpu.memory_space<vmem>>, vector<1x128xf32>
    %4 = vector.broadcast %3 : vector<1x128xf32> to vector<128x128xf32>
    %5 = arith.addf %2, %4 : vector<128x128xf32>
    %c0_5 = arith.constant 0 : index
    %c0_6 = arith.constant 0 : index
    %6 = vector.load %arg2[%c0_5, %c0_6] : memref<128x128xf32, #tpu.memory_space<vmem>>, vector<128x128xf32>
    %7 = arith.addf %5, %6 : vector<128x128xf32>
    %8 = tpu.iota {dimensions = array<i32: 1>} : vector<128x128xi32>
    %cst_7 = arith.constant dense<0xFF800000> : vector<128xf32>
    %9 = vector.multi_reduction <maximumf>, %7, %cst_7 [1] : vector<128x128xf32> to vector<128xf32>
    %10 = vector.shape_cast %9 : vector<128xf32> to vector<128x1xf32>
    %11 = vector.broadcast %10 : vector<128x1xf32> to vector<128x128xf32>
    %12 = arith.cmpf oge, %7, %11 : vector<128x128xf32>
    %c128_i32 = arith.constant 128 : i32
    %13 = vector.broadcast %c128_i32 : i32 to vector<128x128xi32>
    %14 = arith.select %12, %8, %13 : vector<128x128xi1>, vector<128x128xi32>
    %cst_8 = arith.constant dense<2147483647> : vector<128xi32>
    %15 = vector.multi_reduction <minsi>, %14, %cst_8 [1] : vector<128x128xi32> to vector<128xi32>
    %16 = vector.shape_cast %15 : vector<128xi32> to vector<128x1xi32>
    %17 = vector.broadcast %16 : vector<128x1xi32> to vector<128x128xi32>
    %18 = arith.cmpi eq, %8, %17 : vector<128x128xi32>
    %19 = arith.extui %18 : vector<128x128xi1> to vector<128x128xi32>
    %20 = arith.sitofp %19 : vector<128x128xi32> to vector<128x128xf32>
    %c0_9 = arith.constant 0 : index
    %c0_10 = arith.constant 0 : index
    %21 = vector.load %arg5[%c0_9, %c0_10] : memref<128x16xf32, #tpu.memory_space<vmem>>, vector<128x16xf32>
    %cst_11 = arith.constant dense<0.000000e+00> : vector<128x16xf32>
    %22 = tpu.matmul %20, %21, %cst_11 {dimension_numbers = #tpu.dot_dimension_numbers<[1], [0], [0], [1], [0, 0, 1, 1], [], []>} : vector<128x128xf32>, vector<128x16xf32>, vector<128x16xf32> -> vector<128x16xf32>
    %c0_12 = arith.constant 0 : index
    %c0_13 = arith.constant 0 : index
    %23 = vector.load %arg6[%c0_12, %c0_13] : memref<128x16xf32, #tpu.memory_space<vmem>>, vector<128x16xf32>
    tpu.vector_store %arg6[%c0_12, %c0_13], %22 {strides = array<i32>} : memref<128x16xf32, #tpu.memory_space<vmem>>, vector<128x16xf32>,
    %cst_14 = arith.constant dense<0xFF800000> : vector<128xf32>
    %24 = vector.multi_reduction <maximumf>, %5, %cst_14 [1] : vector<128x128xf32> to vector<128xf32>
    %25 = vector.shape_cast %24 : vector<128xf32> to vector<128x1xf32>
    %26 = vector.broadcast %25 : vector<128x1xf32> to vector<128x128xf32>
    %27 = arith.subf %5, %26 : vector<128x128xf32>
    %28 = math.exp %27 : vector<128x128xf32>
    %cst_15 = arith.constant dense<0.000000e+00> : vector<128xf32>
    %29 = vector.multi_reduction <add>, %28, %cst_15 [1] : vector<128x128xf32> to vector<128xf32>
    %30 = vector.shape_cast %29 : vector<128xf32> to vector<128x1xf32>
    %31 = arith.mulf %28, %27 : vector<128x128xf32>
    %cst_16 = arith.constant dense<0.000000e+00> : vector<128xf32>
    %32 = vector.multi_reduction <add>, %31, %cst_16 [1] : vector<128x128xf32> to vector<128xf32>
    %33 = vector.shape_cast %32 : vector<128xf32> to vector<128x1xf32>
    %34 = arith.divf %33, %30 : vector<128x1xf32>
    %35 = math.log %30 : vector<128x1xf32>
    %36 = arith.subf %34, %35 : vector<128x1xf32>
    %cst_17 = arith.constant 4.85203028 : f32
    %37 = vector.broadcast %cst_17 : f32 to vector<128x1xf32>
    %38 = arith.addf %36, %37 : vector<128x1xf32>
    %39 = vector.shape_cast %38 : vector<128x1xf32> to vector<1x128x1xf32>
    %cst_18 = arith.constant dense<0.000000e+00> : vector<1xf32>
    %40 = vector.multi_reduction <add>, %39, %cst_18 [1, 2] : vector<1x128x1xf32> to vector<1xf32>
    %41 = vector.shape_cast %40 : vector<1xf32> to vector<1x1x1xf32>
    %42 = vector.extract %41[0, 0, 0] : f32 from vector<1x1x1xf32>
    %c0_19 = arith.constant 0 : index
    %c0_20 = arith.constant 0 : index
    %43 = memref.load %arg7[%c0_19, %c0_20] : memref<1x1xf32, #tpu.memory_space<smem>>
    memref.store %42, %arg7[%c0_19, %c0_20] : memref<1x1xf32, #tpu.memory_space<smem>>
    %44 = tpu.transpose %16, [1, 0] : vector<128x1xi32> -> vector<1x128xi32>
    %45 = vector.shape_cast %44 : vector<1x128xi32> to vector<1x1x128xi32>
    %c0_21 = arith.constant 0 : index
    %c0_22 = arith.constant 0 : index
    %c0_23 = arith.constant 0 : index
    %46 = vector.load %arg8[%c0_21, %c0_22, %c0_23] : memref<1x1x128xi32, #tpu.memory_space<vmem>>, vector<1x1x128xi32>
    tpu.vector_store %arg8[%c0_21, %c0_22, %c0_23], %45 {strides = array<i32>} : memref<1x1x128xi32, #tpu.memory_space<vmem>>, vector<1x1x128xi32>,
    return
  }
  func.func @transform_0(%arg0: i32) -> (i32, i32) {
    %c0_i32 = arith.constant 0 : i32
    %c0_i32_0 = arith.constant 0 : i32
    return %arg0, %c0_i32 : i32, i32
  }
  func.func @transform_1(%arg0: i32) -> (i32, i32) {
    %c0_i32 = arith.constant 0 : i32
    %c0_i32_0 = arith.constant 0 : i32
    return %arg0, %c0_i32 : i32, i32
  }
  func.func @transform_2(%arg0: i32) -> (i32, i32) {
    %c0_i32 = arith.constant 0 : i32
    %c0_i32_0 = arith.constant 0 : i32
    %c0_i32_1 = arith.constant 0 : i32
    return %c0_i32, %c0_i32_0 : i32, i32
  }
  func.func @transform_3(%arg0: i32) -> (i32, i32) {
    %c0_i32 = arith.constant 0 : i32
    %c0_i32_0 = arith.constant 0 : i32
    %c0_i32_1 = arith.constant 0 : i32
    return %c0_i32, %c0_i32_0 : i32, i32
  }
  func.func @transform_4(%arg0: i32) -> (i32, i32) {
    %c0_i32 = arith.constant 0 : i32
    %c0_i32_0 = arith.constant 0 : i32
    %c0_i32_1 = arith.constant 0 : i32
    return %c0_i32, %c0_i32_0 : i32, i32
  }
  func.func @transform_5(%arg0: i32) -> (i32, i32) {
    %c0_i32 = arith.constant 0 : i32
    %c0_i32_0 = arith.constant 0 : i32
    return %arg0, %c0_i32 : i32, i32
  }
  func.func @transform_6(%arg0: i32) -> (i32, i32) {
    %c0_i32 = arith.constant 0 : i32
    %c0_i32_0 = arith.constant 0 : i32
    return %arg0, %c0_i32 : i32, i32
  }
  func.func @transform_7(%arg0: i32) -> (i32, i32, i32) {
    %c0_i32 = arith.constant 0 : i32
    %c0_i32_0 = arith.constant 0 : i32
    %c0_i32_1 = arith.constant 0 : i32
    return %arg0, %c0_i32, %c0_i32_0 : i32, i32, i32
  }
}

</mosaic_0001>

<llo_original>
// kernel: tpu_custom_call.1
$region0: #{tpu_custom_call.1}
  #allocation0 [shape = 'u32[]', space=smem, size = 0x4, offset = 0x4, fixed_abs, tag = 'smem constant byte address 0x4 - core index']
  #allocation1 [shape = 'u32[72,128]{1,0:T(1,128)}', space=vmem, size = 0x9000, scoped, tag = 'internal scratch']
  %s0 = inlined_call_operand.vmem [shape: f32[128,32], index: 0, kind: input, shape index: {}]
  %s1 = inlined_call_operand.vmem [shape: f32[128,128], index: 1, kind: input, shape index: {}]
  %s2 = inlined_call_operand.vmem [shape: f32[32,128], index: 2, kind: input, shape index: {}]
  %s3 = inlined_call_operand.vmem [shape: f32[1,128], index: 3, kind: input, shape index: {}]
  %s4 = inlined_call_operand.vmem [shape: f32[128,16], index: 4, kind: input, shape index: {}]
  %s5 = inlined_call_operand.vmem [shape: f32[128,16], index: 5, kind: output, shape index: {0}]
  %s6 = inlined_call_operand.hbm [shape: f32[1,1], index: 6, kind: output, shape index: {1}]
  %s7 = inlined_call_operand.hbm [shape: s32[1,1,128], index: 7, kind: output, shape index: {2}]
  %8 = xla_tuple %s5, %s6, %s7
  %s9 = sld [smem:[#allocation0]]
  $region46: #{tpu_custom_call.1} parent=0
    _
  %s11 = ssub.s32 1, %s9
  %s12 = scalar_select 0, %s11, %s9
  $region1: #{tpu_custom_call.1} parent=0
    #allocation2 [shape = 'u8[512]{0}', space=smem, size = 0x200, scoped, tag = 'output window, operand 1, single buffered']
    #allocation3 [shape = 's32[1]{0}', space=sflag, size = 0x4, scoped, tag = 'scoped memory for tpu_custom_call.1']
    #allocation4 [shape = 's32[1]{0}', space=sflag, size = 0x4, scoped, tag = 'scoped memory for tpu_custom_call.1']
    #allocation5 [shape = 'u8[512]{0}', space=vmem, size = 0x400, scoped, tag = 'output window, operand 2, single buffered']
    %13 = vsyncpa [#allocation4], 0
    %14 = vsyncpa [#allocation3], 0
    // Predicated region
    $region2: #{tpu_custom_call.1} parent=1 // pred_check
      _
    $region3: #{tpu_custom_call.1} parent=1 // pred_check_branch
      %16 = sbr.rel (0) target = $region5
    $region4: #{tpu_custom_call.1} parent=1 // pred_region
      _
    $region5: #{tpu_custom_call.1} parent=1 // pred_fallthru
      _
    // Predicated region
    $region6: #{tpu_custom_call.1} parent=1 // pred_check
      _
    $region7: #{tpu_custom_call.1} parent=1 // pred_check_branch
      %18 = sbr.rel (0) target = $region9
    $region8: #{tpu_custom_call.1} parent=1 // pred_region
      _
    $region9: #{tpu_custom_call.1} parent=1 // pred_fallthru
      _
    // Predicated region
    $region10: #{tpu_custom_call.1} parent=1 // pred_check
      _
    $region11: #{tpu_custom_call.1} parent=1 // pred_check_branch
      %20 = sbr.rel (0) target = $region13
    $region12: #{tpu_custom_call.1} parent=1 // pred_region
      _
    $region13: #{tpu_custom_call.1} parent=1 // pred_fallthru
      _
    // Predicated region
    $region14: #{tpu_custom_call.1} parent=1 // pred_check
      _
    $region15: #{tpu_custom_call.1} parent=1 // pred_check_branch
      %22 = sbr.rel (0) target = $region17
    $region16: #{tpu_custom_call.1} parent=1 // pred_region
      _
    $region17: #{tpu_custom_call.1} parent=1 // pred_fallthru
      _
    // Predicated region
    $region18: #{tpu_custom_call.1} parent=1 // pred_check
      _
    $region19: #{tpu_custom_call.1} parent=1 // pred_check_branch
      %24 = sbr.rel (0) target = $region21
    $region20: #{tpu_custom_call.1} parent=1 // pred_region
      _
    $region21: #{tpu_custom_call.1} parent=1 // pred_fallthru
      _
    %v25 = vld [vmem:[%s0] sm:$0xff]
    %v26 = vld [vmem:[%s0 + $0x8] sm:$0xff]
    %v27 = vld [vmem:[%s0 + $0x10] sm:$0xff]
    %v28 = vld [vmem:[%s0 + $0x18] sm:$0xff]
    %v29 = vld [vmem:[%s0 + $0x20] sm:$0xff]
    %v30 = vld [vmem:[%s0 + $0x28] sm:$0xff]
    %v31 = vld [vmem:[%s0 + $0x30] sm:$0xff]
    %v32 = vld [vmem:[%s0 + $0x38] sm:$0xff]
    %v33 = vld [vmem:[%s0 + $0x40] sm:$0xff]
    %v34 = vld [vmem:[%s0 + $0x48] sm:$0xff]
    %v35 = vld [vmem:[%s0 + $0x50] sm:$0xff]
    %v36 = vld [vmem:[%s0 + $0x58] sm:$0xff]
    %v37 = vld [vmem:[%s0 + $0x60] sm:$0xff]
    %v38 = vld [vmem:[%s0 + $0x68] sm:$0xff]
    %v39 = vld [vmem:[%s0 + $0x70] sm:$0xff]
    %v40 = vld [vmem:[%s0 + $0x78] sm:$0xff]
    %v41 = vld [vmem:[%s2] sm:$0xff]
    %v42 = vld [vmem:[%s2 + $0x8] sm:$0xff]
    %v43 = vld [vmem:[%s2 + $0x10] sm:$0xff]
    %v44 = vld [vmem:[%s2 + $0x18] sm:$0xff]
    %v45 = vld [vmem:[%s3] sm:$0x1]
    %v47 = vperm.slane %v45, 0
    %vm49 = vcmask 261120
    %v51 = vsel %vm49, %v25, 0
    %v54 = vsel %vm49, %v26, 0
    %v57 = vsel %vm49, %v27, 0
    %v60 = vsel %vm49, %v28, 0
    %v63 = vsel %vm49, %v29, 0
    %v66 = vsel %vm49, %v30, 0
    %v69 = vsel %vm49, %v31, 0
    %v72 = vsel %vm49, %v32, 0
    %v75 = vsel %vm49, %v33, 0
    %v78 = vsel %vm49, %v34, 0
    %v81 = vsel %vm49, %v35, 0
    %v84 = vsel %vm49, %v36, 0
    %v87 = vsel %vm49, %v37, 0
    %v90 = vsel %vm49, %v38, 0
    %v93 = vsel %vm49, %v39, 0
    %v96 = vsel %vm49, %v40, 0
    %98 = vmatpush.msra.mxu0 0.0
    %99 = vmatpush.msra.mxu0 0.0
    %100 = vmatpush.msra.mxu0 0.0
    %101 = vmatpush.msra.mxu0 0.0
    %102 = vmatpush.msra.mxu0 0.0
    %103 = vmatpush.msra.mxu0 0.0
    %104 = vmatpush.msra.mxu0 0.0
    %105 = vmatpush.msra.mxu0 0.0
    %106 = vmatpush.msra.mxu0 0.0
    %107 = vmatpush.msra.mxu0 0.0
    %108 = vmatpush.msra.mxu0 0.0
    %109 = vmatpush.msra.mxu0 0.0
    %110 = vmatpush.msra.mxu0 %v44
    %111 = vmatpush.msra.mxu0 %v43
    %112 = vmatpush.msra.mxu0 %v42
    %113 = vmatpush.msra.mxu0 %v41
    %114 = vmatmul.f32.gmra.mxu0 %v51
    %v115 = vpop.f32.mrf.mxu0
    %v116 = vadd.f32 %v47, %v115
    %117 = vmatmul.f32.gmra.mxu0 %v54
    %v118 = vpop.f32.mrf.mxu0
    %v119 = vadd.f32 %v47, %v118
    %120 = vmatmul.f32.gmra.mxu0 %v57
    %v121 = vpop.f32.mrf.mxu0
    %v122 = vadd.f32 %v47, %v121
    %123 = vmatmul.f32.gmra.mxu0 %v60
    %v124 = vpop.f32.mrf.mxu0
    %v125 = vadd.f32 %v47, %v124
    %126 = vmatmul.f32.gmra.mxu0 %v63
    %v127 = vpop.f32.mrf.mxu0
    %v128 = vadd.f32 %v47, %v127
    %129 = vmatmul.f32.gmra.mxu0 %v66
    %v130 = vpop.f32.mrf.mxu0
    %v131 = vadd.f32 %v47, %v130
    %132 = vmatmul.f32.gmra.mxu0 %v69
    %v133 = vpop.f32.mrf.mxu0
    %v134 = vadd.f32 %v47, %v133
    %135 = vmatmul.f32.gmra.mxu0 %v72
    %v136 = vpop.f32.mrf.mxu0
    %v137 = vadd.f32 %v47, %v136
    %138 = vmatmul.f32.gmra.mxu0 %v75
    %v139 = vpop.f32.mrf.mxu0
    %v140 = vadd.f32 %v47, %v139
    %141 = vmatmul.f32.gmra.mxu0 %v78
    %v142 = vpop.f32.mrf.mxu0
    %v143 = vadd.f32 %v47, %v142
    %144 = vmatmul.f32.gmra.mxu0 %v81
    %v145 = vpop.f32.mrf.mxu0
    %v146 = vadd.f32 %v47, %v145
    %147 = vmatmul.f32.gmra.mxu0 %v84
    %v148 = vpop.f32.mrf.mxu0
    %v149 = vadd.f32 %v47, %v148
    %150 = vmatmul.f32.gmra.mxu0 %v87
    %v151 = vpop.f32.mrf.mxu0
    %v152 = vadd.f32 %v47, %v151
    %153 = vmatmul.f32.gmra.mxu0 %v90
    %v154 = vpop.f32.mrf.mxu0
    %v155 = vadd.f32 %v47, %v154
    %156 = vmatmul.f32.gmra.mxu0 %v93
    %v157 = vpop.f32.mrf.mxu0
    %v158 = vadd.f32 %v47, %v157
    %159 = vmatmul.f32.gmra.mxu0 %v96
    %v160 = vpop.f32.mrf.mxu0
    %v161 = vadd.f32 %v47, %v160
    %162 = vdwg.mxu0
    %v163 = vld [vmem:[%s1] sm:$0xff]
    %v164 = vld [vmem:[%s1 + $0x8] sm:$0xff]
    %v165 = vld [vmem:[%s1 + $0x10] sm:$0xff]
    %v166 = vld [vmem:[%s1 + $0x18] sm:$0xff]
    %v167 = vld [vmem:[%s1 + $0x20] sm:$0xff]
    %v168 = vld [vmem:[%s1 + $0x28] sm:$0xff]
    %v169 = vld [vmem:[%s1 + $0x30] sm:$0xff]
    %v170 = vld [vmem:[%s1 + $0x38] sm:$0xff]
    %v171 = vld [vmem:[%s1 + $0x40] sm:$0xff]
    %v172 = vld [vmem:[%s1 + $0x48] sm:$0xff]
    %v173 = vld [vmem:[%s1 + $0x50] sm:$0xff]
    %v174 = vld [vmem:[%s1 + $0x58] sm:$0xff]
    %v175 = vld [vmem:[%s1 + $0x60] sm:$0xff]
    %v176 = vld [vmem:[%s1 + $0x68] sm:$0xff]
    %v177 = vld [vmem:[%s1 + $0x70] sm:$0xff]
    %v178 = vld [vmem:[%s1 + $0x78] sm:$0xff]
    %v179 = vadd.f32 %v116, %v163
    %v180 = vadd.f32 %v119, %v164
    %v181 = vadd.f32 %v122, %v165
    %v182 = vadd.f32 %v125, %v166
    %v183 = vadd.f32 %v128, %v167
    %v184 = vadd.f32 %v131, %v168
    %v185 = vadd.f32 %v134, %v169
    %v186 = vadd.f32 %v137, %v170
    %v187 = vadd.f32 %v140, %v171
    %v188 = vadd.f32 %v143, %v172
    %v189 = vadd.f32 %v146, %v173
    %v190 = vadd.f32 %v149, %v174
    %v191 = vadd.f32 %v152, %v175
    %v192 = vadd.f32 %v155, %v176
    %v193 = vadd.f32 %v158, %v177
    %v194 = vadd.f32 %v161, %v178
    %v195 = vlaneseq
    %v196 = vand.u32 %v195, 127
    %197 = vmax.xlane.f32.xlu0 %v179
    %v198 = vpop.xlane.xlu0 %197
    %199 = vmax.xlane.f32.xlu0 %v180
    %v200 = vpop.xlane.xlu0 %199
    %201 = vmax.xlane.f32.xlu0 %v181
    %v202 = vpop.xlane.xlu0 %201
    %203 = vmax.xlane.f32.xlu0 %v182
    %v204 = vpop.xlane.xlu0 %203
    %205 = vmax.xlane.f32.xlu0 %v183
    %v206 = vpop.xlane.xlu0 %205
    %207 = vmax.xlane.f32.xlu0 %v184
    %v208 = vpop.xlane.xlu0 %207
    %209 = vmax.xlane.f32.xlu0 %v185
    %v210 = vpop.xlane.xlu0 %209
    %211 = vmax.xlane.f32.xlu0 %v186
    %v212 = vpop.xlane.xlu0 %211
    %213 = vmax.xlane.f32.xlu0 %v187
    %v214 = vpop.xlane.xlu0 %213
    %215 = vmax.xlane.f32.xlu0 %v188
    %v216 = vpop.xlane.xlu0 %215
    %217 = vmax.xlane.f32.xlu0 %v189
    %v218 = vpop.xlane.xlu0 %217
    %219 = vmax.xlane.f32.xlu0 %v190
    %v220 = vpop.xlane.xlu0 %219
    %221 = vmax.xlane.f32.xlu0 %v191
    %v222 = vpop.xlane.xlu0 %221
    %223 = vmax.xlane.f32.xlu0 %v192
    %v224 = vpop.xlane.xlu0 %223
    %225 = vmax.xlane.f32.xlu0 %v193
    %v226 = vpop.xlane.xlu0 %225
    %227 = vmax.xlane.f32.xlu0 %v194
    %v228 = vpop.xlane.xlu0 %227
    %vm229 = vcmp.ge.f32.partialorder %v179, %v198
    %vm230 = vcmp.ge.f32.partialorder %v180, %v200
    %vm231 = vcmp.ge.f32.partialorder %v181, %v202
    %vm232 = vcmp.ge.f32.partialorder %v182, %v204
    %vm233 = vcmp.ge.f32.partialorder %v183, %v206
    %vm234 = vcmp.ge.f32.partialorder %v184, %v208
    %vm235 = vcmp.ge.f32.partialorder %v185, %v210
    %vm236 = vcmp.ge.f32.partialorder %v186, %v212
    %vm237 = vcmp.ge.f32.partialorder %v187, %v214
    %vm238 = vcmp.ge.f32.partialorder %v188, %v216
    %vm239 = vcmp.ge.f32.partialorder %v189, %v218
    %vm240 = vcmp.ge.f32.partialorder %v190, %v220
    %vm241 = vcmp.ge.f32.partialorder %v191, %v222
    %vm242 = vcmp.ge.f32.partialorder %v192, %v224
    %vm243 = vcmp.ge.f32.partialorder %v193, %v226
    %vm244 = vcmp.ge.f32.partialorder %v194, %v228
    %v245 = vsel %vm229, %v196, 128
    %v246 = vsel %vm230, %v196, 128
    %v247 = vsel %vm231, %v196, 128
    %v248 = vsel %vm232, %v196, 128
    %v249 = vsel %vm233, %v196, 128
    %v250 = vsel %vm234, %v196, 128
    %v251 = vsel %vm235, %v196, 128
    %v252 = vsel %vm236, %v196, 128
    %v253 = vsel %vm237, %v196, 128
    %v254 = vsel %vm238, %v196, 128
    %v255 = vsel %vm239, %v196, 128
    %v256 = vsel %vm240, %v196, 128
    %v257 = vsel %vm241, %v196, 128
    %v258 = vsel %vm242, %v196, 128
    %v259 = vsel %vm243, %v196, 128
    %v260 = vsel %vm244, %v196, 128
    %v261 = vand.u32 %v245, 65535
    %v262 = vshra.s32 %v245, 16
    %v263 = vcvt.s32.f32 %v261
    %v264 = vcvt.s32.f32 %v262
    %265 = vmin.xlane.f32.xlu0 %v264
    %v266 = vpop.xlane.xlu0 %265
    %vm267 = vcmp.eq.f32.partialorder %v264, %v266
    %v268 = vsel %vm267, %v263, inf
    %269 = vmin.xlane.f32.xlu0 %v268
    %v270 = vpop.xlane.xlu0 %269
    %v271 = vcvt.f32.s32 %v270
    %v272 = vcvt.f32.s32 %v266
    %v273 = vshll.u32 %v272, 16
    %v274 = vadd.s32 %v273, %v271
    %v275 = vand.u32 %v246, 65535
    %v276 = vshra.s32 %v246, 16
    %v277 = vcvt.s32.f32 %v275
    %v278 = vcvt.s32.f32 %v276
    %279 = vmin.xlane.f32.xlu0 %v278
    %v280 = vpop.xlane.xlu0 %279
    %vm281 = vcmp.eq.f32.partialorder %v278, %v280
    %v282 = vsel %vm281, %v277, inf
    %283 = vmin.xlane.f32.xlu0 %v282
    %v284 = vpop.xlane.xlu0 %283
    %v285 = vcvt.f32.s32 %v284
    %v286 = vcvt.f32.s32 %v280
    %v287 = vshll.u32 %v286, 16
    %v288 = vadd.s32 %v287, %v285
    %v289 = vand.u32 %v247, 65535
    %v290 = vshra.s32 %v247, 16
    %v291 = vcvt.s32.f32 %v289
    %v292 = vcvt.s32.f32 %v290
    %293 = vmin.xlane.f32.xlu0 %v292
    %v294 = vpop.xlane.xlu0 %293
    %vm295 = vcmp.eq.f32.partialorder %v292, %v294
    %v296 = vsel %vm295, %v291, inf
    %297 = vmin.xlane.f32.xlu0 %v296
    %v298 = vpop.xlane.xlu0 %297
    %v299 = vcvt.f32.s32 %v298
    %v300 = vcvt.f32.s32 %v294
    %v301 = vshll.u32 %v300, 16
    %v302 = vadd.s32 %v301, %v299
    %v303 = vand.u32 %v248, 65535
    %v304 = vshra.s32 %v248, 16
    %v305 = vcvt.s32.f32 %v303
    %v306 = vcvt.s32.f32 %v304
    %307 = vmin.xlane.f32.xlu0 %v306
    %v308 = vpop.xlane.xlu0 %307
    %vm309 = vcmp.eq.f32.partialorder %v306, %v308
    %v310 = vsel %vm309, %v305, inf
    %311 = vmin.xlane.f32.xlu0 %v310
    %v312 = vpop.xlane.xlu0 %311
    %v313 = vcvt.f32.s32 %v312
    %v314 = vcvt.f32.s32 %v308
    %v315 = vshll.u32 %v314, 16
    %v316 = vadd.s32 %v315, %v313
    %v317 = vand.u32 %v249, 65535
    %v318 = vshra.s32 %v249, 16
    %v319 = vcvt.s32.f32 %v317
    %v320 = vcvt.s32.f32 %v318
    %321 = vmin.xlane.f32.xlu0 %v320
    %v322 = vpop.xlane.xlu0 %321
    %vm323 = vcmp.eq.f32.partialorder %v320, %v322
    %v324 = vsel %vm323, %v319, inf
    %325 = vmin.xlane.f32.xlu0 %v324
    %v326 = vpop.xlane.xlu0 %325
    %v327 = vcvt.f32.s32 %v326
    %v328 = vcvt.f32.s32 %v322
    %v329 = vshll.u32 %v328, 16
    %v330 = vadd.s32 %v329, %v327
    %v331 = vand.u32 %v250, 65535
    %v332 = vshra.s32 %v250, 16
    %v333 = vcvt.s32.f32 %v331
    %v334 = vcvt.s32.f32 %v332
    %335 = vmin.xlane.f32.xlu0 %v334
    %v336 = vpop.xlane.xlu0 %335
    %vm337 = vcmp.eq.f32.partialorder %v334, %v336
    %v338 = vsel %vm337, %v333, inf
    %339 = vmin.xlane.f32.xlu0 %v338
    %v340 = vpop.xlane.xlu0 %339
    %v341 = vcvt.f32.s32 %v340
    %v342 = vcvt.f32.s32 %v336
    %v343 = vshll.u32 %v342, 16
    %v344 = vadd.s32 %v343, %v341
    %v345 = vand.u32 %v251, 65535
    %v346 = vshra.s32 %v251, 16
    %v347 = vcvt.s32.f32 %v345
    %v348 = vcvt.s32.f32 %v346
    %349 = vmin.xlane.f32.xlu0 %v348
    %v350 = vpop.xlane.xlu0 %349
    %vm351 = vcmp.eq.f32.partialorder %v348, %v350
    %v352 = vsel %vm351, %v347, inf
    %353 = vmin.xlane.f32.xlu0 %v352
    %v354 = vpop.xlane.xlu0 %353
    %v355 = vcvt.f32.s32 %v354
    %v356 = vcvt.f32.s32 %v350
    %v357 = vshll.u32 %v356, 16
    %v358 = vadd.s32 %v357, %v355
    %v359 = vand.u32 %v252, 65535
    %v360 = vshra.s32 %v252, 16
    %v361 = vcvt.s32.f32 %v359
    %v362 = vcvt.s32.f32 %v360
    %363 = vmin.xlane.f32.xlu0 %v362
    %v364 = vpop.xlane.xlu0 %363
    %vm365 = vcmp.eq.f32.partialorder %v362, %v364
    %v366 = vsel %vm365, %v361, inf
    %367 = vmin.xlane.f32.xlu0 %v366
    %v368 = vpop.xlane.xlu0 %367
    %v369 = vcvt.f32.s32 %v368
    %v370 = vcvt.f32.s32 %v364
    %v371 = vshll.u32 %v370, 16
    %v372 = vadd.s32 %v371, %v369
    %v373 = vand.u32 %v253, 65535
    %v374 = vshra.s32 %v253, 16
    %v375 = vcvt.s32.f32 %v373
    %v376 = vcvt.s32.f32 %v374
    %377 = vmin.xlane.f32.xlu0 %v376
    %v378 = vpop.xlane.xlu0 %377
    %vm379 = vcmp.eq.f32.partialorder %v376, %v378
    %v380 = vsel %vm379, %v375, inf
    %381 = vmin.xlane.f32.xlu0 %v380
    %v382 = vpop.xlane.xlu0 %381
    %v383 = vcvt.f32.s32 %v382
    %v384 = vcvt.f32.s32 %v378
    %v385 = vshll.u32 %v384, 16
    %v386 = vadd.s32 %v385, %v383
    %v387 = vand.u32 %v254, 65535
    %v388 = vshra.s32 %v254, 16
    %v389 = vcvt.s32.f32 %v387
    %v390 = vcvt.s32.f32 %v388
    %391 = vmin.xlane.f32.xlu0 %v390
    %v392 = vpop.xlane.xlu0 %391
    %vm393 = vcmp.eq.f32.partialorder %v390, %v392
    %v394 = vsel %vm393, %v389, inf
    %395 = vmin.xlane.f32.xlu0 %v394
    %v396 = vpop.xlane.xlu0 %395
    %v397 = vcvt.f32.s32 %v396
    %v398 = vcvt.f32.s32 %v392
    %v399 = vshll.u32 %v398, 16
    %v400 = vadd.s32 %v399, %v397
    %v401 = vand.u32 %v255, 65535
    %v402 = vshra.s32 %v255, 16
    %v403 = vcvt.s32.f32 %v401
    %v404 = vcvt.s32.f32 %v402
    %405 = vmin.xlane.f32.xlu0 %v404
    %v406 = vpop.xlane.xlu0 %405
    %vm407 = vcmp.eq.f32.partialorder %v404, %v406
    %v408 = vsel %vm407, %v403, inf
    %409 = vmin.xlane.f32.xlu0 %v408
    %v410 = vpop.xlane.xlu0 %409
    %v411 = vcvt.f32.s32 %v410
    %v412 = vcvt.f32.s32 %v406
    %v413 = vshll.u32 %v412, 16
    %v414 = vadd.s32 %v413, %v411
    %v415 = vand.u32 %v256, 65535
    %v416 = vshra.s32 %v256, 16
    %v417 = vcvt.s32.f32 %v415
    %v418 = vcvt.s32.f32 %v416
    %419 = vmin.xlane.f32.xlu0 %v418
    %v420 = vpop.xlane.xlu0 %419
    %vm421 = vcmp.eq.f32.partialorder %v418, %v420
    %v422 = vsel %vm421, %v417, inf
    %423 = vmin.xlane.f32.xlu0 %v422
    %v424 = vpop.xlane.xlu0 %423
    %v425 = vcvt.f32.s32 %v424
    %v426 = vcvt.f32.s32 %v420
    %v427 = vshll.u32 %v426, 16
    %v428 = vadd.s32 %v427, %v425
    %v429 = vand.u32 %v257, 65535
    %v430 = vshra.s32 %v257, 16
    %v431 = vcvt.s32.f32 %v429
    %v432 = vcvt.s32.f32 %v430
    %433 = vmin.xlane.f32.xlu0 %v432
    %v434 = vpop.xlane.xlu0 %433
    %vm435 = vcmp.eq.f32.partialorder %v432, %v434
    %v436 = vsel %vm435, %v431, inf
    %437 = vmin.xlane.f32.xlu0 %v436
    %v438 = vpop.xlane.xlu0 %437
    %v439 = vcvt.f32.s32 %v438
    %v440 = vcvt.f32.s32 %v434
    %v441 = vshll.u32 %v440, 16
    %v442 = vadd.s32 %v441, %v439
    %v443 = vand.u32 %v258, 65535
    %v444 = vshra.s32 %v258, 16
    %v445 = vcvt.s32.f32 %v443
    %v446 = vcvt.s32.f32 %v444
    %447 = vmin.xlane.f32.xlu0 %v446
    %v448 = vpop.xlane.xlu0 %447
    %vm449 = vcmp.eq.f32.partialorder %v446, %v448
    %v450 = vsel %vm449, %v445, inf
    %451 = vmin.xlane.f32.xlu0 %v450
    %v452 = vpop.xlane.xlu0 %451
    %v453 = vcvt.f32.s32 %v452
    %v454 = vcvt.f32.s32 %v448
    %v455 = vshll.u32 %v454, 16
    %v456 = vadd.s32 %v455, %v453
    %v457 = vand.u32 %v259, 65535
    %v458 = vshra.s32 %v259, 16
    %v459 = vcvt.s32.f32 %v457
    %v460 = vcvt.s32.f32 %v458
    %461 = vmin.xlane.f32.xlu0 %v460
    %v462 = vpop.xlane.xlu0 %461
    %vm463 = vcmp.eq.f32.partialorder %v460, %v462
    %v464 = vsel %vm463, %v459, inf
    %465 = vmin.xlane.f32.xlu0 %v464
    %v466 = vpop.xlane.xlu0 %465
    %v467 = vcvt.f32.s32 %v466
    %v468 = vcvt.f32.s32 %v462
    %v469 = vshll.u32 %v468, 16
    %v470 = vadd.s32 %v469, %v467
    %v471 = vand.u32 %v260, 65535
    %v472 = vshra.s32 %v260, 16
    %v473 = vcvt.s32.f32 %v471
    %v474 = vcvt.s32.f32 %v472
    %475 = vmin.xlane.f32.xlu0 %v474
    %v476 = vpop.xlane.xlu0 %475
    %vm477 = vcmp.eq.f32.partialorder %v474, %v476
    %v478 = vsel %vm477, %v473, inf
    %479 = vmin.xlane.f32.xlu0 %v478
    %v480 = vpop.xlane.xlu0 %479
    %v481 = vcvt.f32.s32 %v480
    %v482 = vcvt.f32.s32 %v476
    %v483 = vshll.u32 %v482, 16
    %v484 = vadd.s32 %v483, %v481
    %vm485 = vcmp.eq.s32.totalorder %v196, %v274
    %vm486 = vcmp.eq.s32.totalorder %v196, %v288
    %vm487 = vcmp.eq.s32.totalorder %v196, %v302
    %vm488 = vcmp.eq.s32.totalorder %v196, %v316
    %vm489 = vcmp.eq.s32.totalorder %v196, %v330
    %vm490 = vcmp.eq.s32.totalorder %v196, %v344
    %vm491 = vcmp.eq.s32.totalorder %v196, %v358
    %vm492 = vcmp.eq.s32.totalorder %v196, %v372
    %vm493 = vcmp.eq.s32.totalorder %v196, %v386
    %vm494 = vcmp.eq.s32.totalorder %v196, %v400
    %vm495 = vcmp.eq.s32.totalorder %v196, %v414
    %vm496 = vcmp.eq.s32.totalorder %v196, %v428
    %vm497 = vcmp.eq.s32.totalorder %v196, %v442
    %vm498 = vcmp.eq.s32.totalorder %v196, %v456
    %vm499 = vcmp.eq.s32.totalorder %v196, %v470
    %vm500 = vcmp.eq.s32.totalorder %v196, %v484
    %v501 = vsel %vm485, 1, 0
    %v502 = vsel %vm486, 1, 0
    %v503 = vsel %vm487, 1, 0
    %v504 = vsel %vm488, 1, 0
    %v505 = vsel %vm489, 1, 0
    %v506 = vsel %vm490, 1, 0
    %v507 = vsel %vm491, 1, 0
    %v508 = vsel %vm492, 1, 0
    %v509 = vsel %vm493, 1, 0
    %v510 = vsel %vm494, 1, 0
    %v511 = vsel %vm495, 1, 0
    %v512 = vsel %vm496, 1, 0
    %v513 = vsel %vm497, 1, 0
    %v514 = vsel %vm498, 1, 0
    %v515 = vsel %vm499, 1, 0
    %v516 = vsel %vm500, 1, 0
    %v517 = vcvt.s32.f32 %v501
    %v518 = vcvt.s32.f32 %v502
    %v519 = vcvt.s32.f32 %v503
    %v520 = vcvt.s32.f32 %v504
    %v521 = vcvt.s32.f32 %v505
    %v522 = vcvt.s32.f32 %v506
    %v523 = vcvt.s32.f32 %v507
    %v524 = vcvt.s32.f32 %v508
    %v525 = vcvt.s32.f32 %v509
    %v526 = vcvt.s32.f32 %v510
    %v527 = vcvt.s32.f32 %v511
    %v528 = vcvt.s32.f32 %v512
    %v529 = vcvt.s32.f32 %v513
    %v530 = vcvt.s32.f32 %v514
    %v531 = vcvt.s32.f32 %v515
    %v532 = vcvt.s32.f32 %v516
    %v533 = vld [vmem:[%s4] sm:$0xff]
    %v534 = vld [vmem:[%s4 + $0x8] sm:$0xff]
    %v535 = vld [vmem:[%s4 + $0x10] sm:$0xff]
    %v536 = vld [vmem:[%s4 + $0x18] sm:$0xff]
    %v537 = vld [vmem:[%s4 + $0x20] sm:$0xff]
    %v538 = vld [vmem:[%s4 + $0x28] sm:$0xff]
    %v539 = vld [vmem:[%s4 + $0x30] sm:$0xff]
    %v540 = vld [vmem:[%s4 + $0x38] sm:$0xff]
    %v541 = vld [vmem:[%s4 + $0x40] sm:$0xff]
    %v542 = vld [vmem:[%s4 + $0x48] sm:$0xff]
    %v543 = vld [vmem:[%s4 + $0x50] sm:$0xff]
    %v544 = vld [vmem:[%s4 + $0x58] sm:$0xff]
    %v545 = vld [vmem:[%s4 + $0x60] sm:$0xff]
    %v546 = vld [vmem:[%s4 + $0x68] sm:$0xff]
    %v547 = vld [vmem:[%s4 + $0x70] sm:$0xff]
    %v548 = vld [vmem:[%s4 + $0x78] sm:$0xff]
    %549 = vmatpush.msra.mxu0 %v548
    %550 = vmatpush.msra.mxu0 %v547
    %551 = vmatpush.msra.mxu0 %v546
    %552 = vmatpush.msra.mxu0 %v545
    %553 = vmatpush.msra.mxu0 %v544
    %554 = vmatpush.msra.mxu0 %v543
    %555 = vmatpush.msra.mxu0 %v542
    %556 = vmatpush.msra.mxu0 %v541
    %557 = vmatpush.msra.mxu0 %v540
    %558 = vmatpush.msra.mxu0 %v539
    %559 = vmatpush.msra.mxu0 %v538
    %560 = vmatpush.msra.mxu0 %v537
    %561 = vmatpush.msra.mxu0 %v536
    %562 = vmatpush.msra.mxu0 %v535
    %563 = vmatpush.msra.mxu0 %v534
    %564 = vmatpush.msra.mxu0 %v533
    %565 = vmatmul.f32.gmra.mxu0 %v517
    %v566 = vpop.f32.mrf.mxu0
    %v567 = vadd.f32 0.0, %v566
    %568 = vmatmul.f32.gmra.mxu0 %v518
    %v569 = vpop.f32.mrf.mxu0
    %v570 = vadd.f32 0.0, %v569
    %571 = vmatmul.f32.gmra.mxu0 %v519
    %v572 = vpop.f32.mrf.mxu0
    %v573 = vadd.f32 0.0, %v572
    %574 = vmatmul.f32.gmra.mxu0 %v520
    %v575 = vpop.f32.mrf.mxu0
    %v576 = vadd.f32 0.0, %v575
    %577 = vmatmul.f32.gmra.mxu0 %v521
    %v578 = vpop.f32.mrf.mxu0
    %v579 = vadd.f32 0.0, %v578
    %580 = vmatmul.f32.gmra.mxu0 %v522
    %v581 = vpop.f32.mrf.mxu0
    %v582 = vadd.f32 0.0, %v581
    %583 = vmatmul.f32.gmra.mxu0 %v523
    %v584 = vpop.f32.mrf.mxu0
    %v585 = vadd.f32 0.0, %v584
    %586 = vmatmul.f32.gmra.mxu0 %v524
    %v587 = vpop.f32.mrf.mxu0
    %v588 = vadd.f32 0.0, %v587
    %589 = vmatmul.f32.gmra.mxu0 %v525
    %v590 = vpop.f32.mrf.mxu0
    %v591 = vadd.f32 0.0, %v590
    %592 = vmatmul.f32.gmra.mxu0 %v526
    %v593 = vpop.f32.mrf.mxu0
    %v594 = vadd.f32 0.0, %v593
    %595 = vmatmul.f32.gmra.mxu0 %v527
    %v596 = vpop.f32.mrf.mxu0
    %v597 = vadd.f32 0.0, %v596
    %598 = vmatmul.f32.gmra.mxu0 %v528
    %v599 = vpop.f32.mrf.mxu0
    %v600 = vadd.f32 0.0, %v599
    %601 = vmatmul.f32.gmra.mxu0 %v529
    %v602 = vpop.f32.mrf.mxu0
    %v603 = vadd.f32 0.0, %v602
    %604 = vmatmul.f32.gmra.mxu0 %v530
    %v605 = vpop.f32.mrf.mxu0
    %v606 = vadd.f32 0.0, %v605
    %607 = vmatmul.f32.gmra.mxu0 %v531
    %v608 = vpop.f32.mrf.mxu0
    %v609 = vadd.f32 0.0, %v608
    %610 = vmatmul.f32.gmra.mxu0 %v532
    %v611 = vpop.f32.mrf.mxu0
    %v612 = vadd.f32 0.0, %v611
    %613 = vdwg.mxu0
    %vm614 = vcmask 130048
    %615 = vst.msk [vmem:[%s5] sm:$0xff] %vm614, %v567
    %616 = vst.msk [vmem:[%s5 + $0x8] sm:$0xff] %vm614, %v570
    %617 = vst.msk [vmem:[%s5 + $0x10] sm:$0xff] %vm614, %v573
    %618 = vst.msk [vmem:[%s5 + $0x18] sm:$0xff] %vm614, %v576
    %619 = vst.msk [vmem:[%s5 + $0x20] sm:$0xff] %vm614, %v579
    %620 = vst.msk [vmem:[%s5 + $0x28] sm:$0xff] %vm614, %v582
    %621 = vst.msk [vmem:[%s5 + $0x30] sm:$0xff] %vm614, %v585
    %622 = vst.msk [vmem:[%s5 + $0x38] sm:$0xff] %vm614, %v588
    %623 = vst.msk [vmem:[%s5 + $0x40] sm:$0xff] %vm614, %v591
    %624 = vst.msk [vmem:[%s5 + $0x48] sm:$0xff] %vm614, %v594
    %625 = vst.msk [vmem:[%s5 + $0x50] sm:$0xff] %vm614, %v597
    %626 = vst.msk [vmem:[%s5 + $0x58] sm:$0xff] %vm614, %v600
    %627 = vst.msk [vmem:[%s5 + $0x60] sm:$0xff] %vm614, %v603
    %628 = vst.msk [vmem:[%s5 + $0x68] sm:$0xff] %vm614, %v606
    %629 = vst.msk [vmem:[%s5 + $0x70] sm:$0xff] %vm614, %v609
    %630 = vst.msk [vmem:[%s5 + $0x78] sm:$0xff] %vm614, %v612
    %631 = vmax.xlane.f32.xlu0 %v116
    %v632 = vpop.xlane.xlu0 %631
    %633 = vmax.xlane.f32.xlu0 %v119
    %v634 = vpop.xlane.xlu0 %633
    %635 = vmax.xlane.f32.xlu0 %v122
    %v636 = vpop.xlane.xlu0 %635
    %637 = vmax.xlane.f32.xlu0 %v125
    %v638 = vpop.xlane.xlu0 %637
    %639 = vmax.xlane.f32.xlu0 %v128
    %v640 = vpop.xlane.xlu0 %639
    %641 = vmax.xlane.f32.xlu0 %v131
    %v642 = vpop.xlane.xlu0 %641
    %643 = vmax.xlane.f32.xlu0 %v134
    %v644 = vpop.xlane.xlu0 %643
    %645 = vmax.xlane.f32.xlu0 %v137
    %v646 = vpop.xlane.xlu0 %645
    %647 = vmax.xlane.f32.xlu0 %v140
    %v648 = vpop.xlane.xlu0 %647
    %649 = vmax.xlane.f32.xlu0 %v143
    %v650 = vpop.xlane.xlu0 %649
    %651 = vmax.xlane.f32.xlu0 %v146
    %v652 = vpop.xlane.xlu0 %651
    %653 = vmax.xlane.f32.xlu0 %v149
    %v654 = vpop.xlane.xlu0 %653
    %655 = vmax.xlane.f32.xlu0 %v152
    %v656 = vpop.xlane.xlu0 %655
    %657 = vmax.xlane.f32.xlu0 %v155
    %v658 = vpop.xlane.xlu0 %657
    %659 = vmax.xlane.f32.xlu0 %v158
    %v660 = vpop.xlane.xlu0 %659
    %661 = vmax.xlane.f32.xlu0 %v161
    %v662 = vpop.xlane.xlu0 %661
    %v663 = vsub.f32 %v116, %v632
    %v664 = vsub.f32 %v119, %v634
    %v665 = vsub.f32 %v122, %v636
    %v666 = vsub.f32 %v125, %v638
    %v667 = vsub.f32 %v128, %v640
    %v668 = vsub.f32 %v131, %v642
    %v669 = vsub.f32 %v134, %v644
    %v670 = vsub.f32 %v137, %v646
    %v671 = vsub.f32 %v140, %v648
    %v672 = vsub.f32 %v143, %v650
    %v673 = vsub.f32 %v146, %v652
    %v674 = vsub.f32 %v149, %v654
    %v675 = vsub.f32 %v152, %v656
    %v676 = vsub.f32 %v155, %v658
    %v677 = vsub.f32 %v158, %v660
    %v678 = vsub.f32 %v161, %v662
    %v679 = vmul.f32 %v663, 1.442695
    %v680 = vpow.pop %v679
    %v681 = vmul.f32 %v664, 1.442695
    %v682 = vpow.pop %v681
    %v683 = vmul.f32 %v665, 1.442695
    %v684 = vpow.pop %v683
    %v685 = vmul.f32 %v666, 1.442695
    %v686 = vpow.pop %v685
    %v687 = vmul.f32 %v667, 1.442695
    %v688 = vpow.pop %v687
    %v689 = vmul.f32 %v668, 1.442695
    %v690 = vpow.pop %v689
    %v691 = vmul.f32 %v669, 1.442695
    %v692 = vpow.pop %v691
    %v693 = vmul.f32 %v670, 1.442695
    %v694 = vpow.pop %v693
    %v695 = vmul.f32 %v671, 1.442695
    %v696 = vpow.pop %v695
    %v697 = vmul.f32 %v672, 1.442695
    %v698 = vpow.pop %v697
    %v699 = vmul.f32 %v673, 1.442695
    %v700 = vpow.pop %v699
    %v701 = vmul.f32 %v674, 1.442695
    %v702 = vpow.pop %v701
    %v703 = vmul.f32 %v675, 1.442695
    %v704 = vpow.pop %v703
    %v705 = vmul.f32 %v676, 1.442695
    %v706 = vpow.pop %v705
    %v707 = vmul.f32 %v677, 1.442695
    %v708 = vpow.pop %v707
    %v709 = vmul.f32 %v678, 1.442695
    %v710 = vpow.pop %v709
    %711 = vadd.xlane.f32.xlu0 %v680
    %v712 = vpop.xlane.xlu0 %711
    %713 = vadd.xlane.f32.xlu0 %v682
    %v714 = vpop.xlane.xlu0 %713
    %715 = vadd.xlane.f32.xlu0 %v684
    %v716 = vpop.xlane.xlu0 %715
    %717 = vadd.xlane.f32.xlu0 %v686
    %v718 = vpop.xlane.xlu0 %717
    %719 = vadd.xlane.f32.xlu0 %v688
    %v720 = vpop.xlane.xlu0 %719
    %721 = vadd.xlane.f32.xlu0 %v690
    %v722 = vpop.xlane.xlu0 %721
    %723 = vadd.xlane.f32.xlu0 %v692
    %v724 = vpop.xlane.xlu0 %723
    %725 = vadd.xlane.f32.xlu0 %v694
    %v726 = vpop.xlane.xlu0 %725
    %727 = vadd.xlane.f32.xlu0 %v696
    %v728 = vpop.xlane.xlu0 %727
    %729 = vadd.xlane.f32.xlu0 %v698
    %v730 = vpop.xlane.xlu0 %729
    %731 = vadd.xlane.f32.xlu0 %v700
    %v732 = vpop.xlane.xlu0 %731
    %733 = vadd.xlane.f32.xlu0 %v702
    %v734 = vpop.xlane.xlu0 %733
    %735 = vadd.xlane.f32.xlu0 %v704
    %v736 = vpop.xlane.xlu0 %735
    %737 = vadd.xlane.f32.xlu0 %v706
    %v738 = vpop.xlane.xlu0 %737
    %739 = vadd.xlane.f32.xlu0 %v708
    %v740 = vpop.xlane.xlu0 %739
    %741 = vadd.xlane.f32.xlu0 %v710
    %v742 = vpop.xlane.xlu0 %741
    %v743 = vmul.f32 %v680, %v663
    %v744 = vmul.f32 %v682, %v664
    %v745 = vmul.f32 %v684, %v665
    %v746 = vmul.f32 %v686, %v666
    %v747 = vmul.f32 %v688, %v667
    %v748 = vmul.f32 %v690, %v668
    %v749 = vmul.f32 %v692, %v669
    %v750 = vmul.f32 %v694, %v670
    %v751 = vmul.f32 %v696, %v671
    %v752 = vmul.f32 %v698, %v672
    %v753 = vmul.f32 %v700, %v673
    %v754 = vmul.f32 %v702, %v674
    %v755 = vmul.f32 %v704, %v675
    %v756 = vmul.f32 %v706, %v676
    %v757 = vmul.f32 %v708, %v677
    %v758 = vmul.f32 %v710, %v678
    %759 = vadd.xlane.f32.xlu0 %v743
    %v760 = vpop.xlane.xlu0 %759
    %761 = vadd.xlane.f32.xlu0 %v744
    %v762 = vpop.xlane.xlu0 %761
    %763 = vadd.xlane.f32.xlu0 %v745
    %v764 = vpop.xlane.xlu0 %763
    %765 = vadd.xlane.f32.xlu0 %v746
    %v766 = vpop.xlane.xlu0 %765
    %767 = vadd.xlane.f32.xlu0 %v747
    %v768 = vpop.xlane.xlu0 %767
    %769 = vadd.xlane.f32.xlu0 %v748
    %v770 = vpop.xlane.xlu0 %769
    %771 = vadd.xlane.f32.xlu0 %v749
    %v772 = vpop.xlane.xlu0 %771
    %773 = vadd.xlane.f32.xlu0 %v750
    %v774 = vpop.xlane.xlu0 %773
    %775 = vadd.xlane.f32.xlu0 %v751
    %v776 = vpop.xlane.xlu0 %775
    %777 = vadd.xlane.f32.xlu0 %v752
    %v778 = vpop.xlane.xlu0 %777
    %779 = vadd.xlane.f32.xlu0 %v753
    %v780 = vpop.xlane.xlu0 %779
    %781 = vadd.xlane.f32.xlu0 %v754
    %v782 = vpop.xlane.xlu0 %781
    %783 = vadd.xlane.f32.xlu0 %v755
    %v784 = vpop.xlane.xlu0 %783
    %785 = vadd.xlane.f32.xlu0 %v756
    %v786 = vpop.xlane.xlu0 %785
    %787 = vadd.xlane.f32.xlu0 %v757
    %v788 = vpop.xlane.xlu0 %787
    %789 = vadd.xlane.f32.xlu0 %v758
    %v790 = vpop.xlane.xlu0 %789
    %v791 = vrcp.pop %v712
    %v792 = vmul.f32 %v712, %v791
    %v793 = vsub.f32 1.0, %v792
    %v794 = vmul.f32 %v791, %v793
    %v795 = vadd.f32 %v791, %v794
    %vm796 = vweird.f32 %v712
    %vm797 = vweird.f32 %v791
    %vm798 = vmor %vm796, %vm797
    %v799 = vsel %vm798, %v791, %v795
    %v800 = vand.u32 2147483647, %v712
    %vm801 = vcmp.eq.f32.partialorder %v800, 8.507059e+37
    %v802 = vand.u32 %v712, 2147483648
    %v803 = vor.u32 1.1754944e-38, %v802
    %v804 = vsel %vm801, %v803, %v799
    %v805 = vmul.f32 %v760, %v804
    %v806 = vrcp.pop %v714
    %v807 = vmul.f32 %v714, %v806
    %v808 = vsub.f32 1.0, %v807
    %v809 = vmul.f32 %v806, %v808
    %v810 = vadd.f32 %v806, %v809
    %vm811 = vweird.f32 %v714
    %vm812 = vweird.f32 %v806
    %vm813 = vmor %vm811, %vm812
    %v814 = vsel %vm813, %v806, %v810
    %v815 = vand.u32 2147483647, %v714
    %vm816 = vcmp.eq.f32.partialorder %v815, 8.507059e+37
    %v817 = vand.u32 %v714, 2147483648
    %v818 = vor.u32 1.1754944e-38, %v817
    %v819 = vsel %vm816, %v818, %v814
    %v820 = vmul.f32 %v762, %v819
    %v821 = vrcp.pop %v716
    %v822 = vmul.f32 %v716, %v821
    %v823 = vsub.f32 1.0, %v822
    %v824 = vmul.f32 %v821, %v823
    %v825 = vadd.f32 %v821, %v824
    %vm826 = vweird.f32 %v716
    %vm827 = vweird.f32 %v821
    %vm828 = vmor %vm826, %vm827
    %v829 = vsel %vm828, %v821, %v825
    %v830 = vand.u32 2147483647, %v716
    %vm831 = vcmp.eq.f32.partialorder %v830, 8.507059e+37
    %v832 = vand.u32 %v716, 2147483648
    %v833 = vor.u32 1.1754944e-38, %v832
    %v834 = vsel %vm831, %v833, %v829
    %v835 = vmul.f32 %v764, %v834
    %v836 = vrcp.pop %v718
    %v837 = vmul.f32 %v718, %v836
    %v838 = vsub.f32 1.0, %v837
    %v839 = vmul.f32 %v836, %v838
    %v840 = vadd.f32 %v836, %v839
    %vm841 = vweird.f32 %v718
    %vm842 = vweird.f32 %v836
    %vm843 = vmor %vm841, %vm842
    %v844 = vsel %vm843, %v836, %v840
    %v845 = vand.u32 2147483647, %v718
    %vm846 = vcmp.eq.f32.partialorder %v845, 8.507059e+37
    %v847 = vand.u32 %v718, 2147483648
    %v848 = vor.u32 1.1754944e-38, %v847
    %v849 = vsel %vm846, %v848, %v844
    %v850 = vmul.f32 %v766, %v849
    %v851 = vrcp.pop %v720
    %v852 = vmul.f32 %v720, %v851
    %v853 = vsub.f32 1.0, %v852
    %v854 = vmul.f32 %v851, %v853
    %v855 = vadd.f32 %v851, %v854
    %vm856 = vweird.f32 %v720
    %vm857 = vweird.f32 %v851
    %vm858 = vmor %vm856, %vm857
    %v859 = vsel %vm858, %v851, %v855
    %v860 = vand.u32 2147483647, %v720
    %vm861 = vcmp.eq.f32.partialorder %v860, 8.507059e+37
    %v862 = vand.u32 %v720, 2147483648
    %v863 = vor.u32 1.1754944e-38, %v862
    %v864 = vsel %vm861, %v863, %v859
    %v865 = vmul.f32 %v768, %v864
    %v866 = vrcp.pop %v722
    %v867 = vmul.f32 %v722, %v866
    %v868 = vsub.f32 1.0, %v867
    %v869 = vmul.f32 %v866, %v868
    %v870 = vadd.f32 %v866, %v869
    %vm871 = vweird.f32 %v722
    %vm872 = vweird.f32 %v866
    %vm873 = vmor %vm871, %vm872
    %v874 = vsel %vm873, %v866, %v870
    %v875 = vand.u32 2147483647, %v722
    %vm876 = vcmp.eq.f32.partialorder %v875, 8.507059e+37
    %v877 = vand.u32 %v722, 2147483648
    %v878 = vor.u32 1.1754944e-38, %v877
    %v879 = vsel %vm876, %v878, %v874
    %v880 = vmul.f32 %v770, %v879
    %v881 = vrcp.pop %v724
    %v882 = vmul.f32 %v724, %v881
    %v883 = vsub.f32 1.0, %v882
    %v884 = vmul.f32 %v881, %v883
    %v885 = vadd.f32 %v881, %v884
    %vm886 = vweird.f32 %v724
    %vm887 = vweird.f32 %v881
    %vm888 = vmor %vm886, %vm887
    %v889 = vsel %vm888, %v881, %v885
    %v890 = vand.u32 2147483647, %v724
    %vm891 = vcmp.eq.f32.partialorder %v890, 8.507059e+37
    %v892 = vand.u32 %v724, 2147483648
    %v893 = vor.u32 1.1754944e-38, %v892
    %v894 = vsel %vm891, %v893, %v889
    %v895 = vmul.f32 %v772, %v894
    %v896 = vrcp.pop %v726
    %v897 = vmul.f32 %v726, %v896
    %v898 = vsub.f32 1.0, %v897
    %v899 = vmul.f32 %v896, %v898
    %v900 = vadd.f32 %v896, %v899
    %vm901 = vweird.f32 %v726
    %vm902 = vweird.f32 %v896
    %vm903 = vmor %vm901, %vm902
    %v904 = vsel %vm903, %v896, %v900
    %v905 = vand.u32 2147483647, %v726
    %vm906 = vcmp.eq.f32.partialorder %v905, 8.507059e+37
    %v907 = vand.u32 %v726, 2147483648
    %v908 = vor.u32 1.1754944e-38, %v907
    %v909 = vsel %vm906, %v908, %v904
    %v910 = vmul.f32 %v774, %v909
    %v911 = vrcp.pop %v728
    %v912 = vmul.f32 %v728, %v911
    %v913 = vsub.f32 1.0, %v912
    %v914 = vmul.f32 %v911, %v913
    %v915 = vadd.f32 %v911, %v914
    %vm916 = vweird.f32 %v728
    %vm917 = vweird.f32 %v911
    %vm918 = vmor %vm916, %vm917
    %v919 = vsel %vm918, %v911, %v915
    %v920 = vand.u32 2147483647, %v728
    %vm921 = vcmp.eq.f32.partialorder %v920, 8.507059e+37
    %v922 = vand.u32 %v728, 2147483648
    %v923 = vor.u32 1.1754944e-38, %v922
    %v924 = vsel %vm921, %v923, %v919
    %v925 = vmul.f32 %v776, %v924
    %v926 = vrcp.pop %v730
    %v927 = vmul.f32 %v730, %v926
    %v928 = vsub.f32 1.0, %v927
    %v929 = vmul.f32 %v926, %v928
    %v930 = vadd.f32 %v926, %v929
    %vm931 = vweird.f32 %v730
    %vm932 = vweird.f32 %v926
    %vm933 = vmor %vm931, %vm932
    %v934 = vsel %vm933, %v926, %v930
    %v935 = vand.u32 2147483647, %v730
    %vm936 = vcmp.eq.f32.partialorder %v935, 8.507059e+37
    %v937 = vand.u32 %v730, 2147483648
    %v938 = vor.u32 1.1754944e-38, %v937
    %v939 = vsel %vm936, %v938, %v934
    %v940 = vmul.f32 %v778, %v939
    %v941 = vrcp.pop %v732
    %v942 = vmul.f32 %v732, %v941
    %v943 = vsub.f32 1.0, %v942
    %v944 = vmul.f32 %v941, %v943
    %v945 = vadd.f32 %v941, %v944
    %vm946 = vweird.f32 %v732
    %vm947 = vweird.f32 %v941
    %vm948 = vmor %vm946, %vm947
    %v949 = vsel %vm948, %v941, %v945
    %v950 = vand.u32 2147483647, %v732
    %vm951 = vcmp.eq.f32.partialorder %v950, 8.507059e+37
    %v952 = vand.u32 %v732, 2147483648
    %v953 = vor.u32 1.1754944e-38, %v952
    %v954 = vsel %vm951, %v953, %v949
    %v955 = vmul.f32 %v780, %v954
    %v956 = vrcp.pop %v734
    %v957 = vmul.f32 %v734, %v956
    %v958 = vsub.f32 1.0, %v957
    %v959 = vmul.f32 %v956, %v958
    %v960 = vadd.f32 %v956, %v959
    %vm961 = vweird.f32 %v734
    %vm962 = vweird.f32 %v956
    %vm963 = vmor %vm961, %vm962
    %v964 = vsel %vm963, %v956, %v960
    %v965 = vand.u32 2147483647, %v734
    %vm966 = vcmp.eq.f32.partialorder %v965, 8.507059e+37
    %v967 = vand.u32 %v734, 2147483648
    %v968 = vor.u32 1.1754944e-38, %v967
    %v969 = vsel %vm966, %v968, %v964
    %v970 = vmul.f32 %v782, %v969
    %v971 = vrcp.pop %v736
    %v972 = vmul.f32 %v736, %v971
    %v973 = vsub.f32 1.0, %v972
    %v974 = vmul.f32 %v971, %v973
    %v975 = vadd.f32 %v971, %v974
    %vm976 = vweird.f32 %v736
    %vm977 = vweird.f32 %v971
    %vm978 = vmor %vm976, %vm977
    %v979 = vsel %vm978, %v971, %v975
    %v980 = vand.u32 2147483647, %v736
    %vm981 = vcmp.eq.f32.partialorder %v980, 8.507059e+37
    %v982 = vand.u32 %v736, 2147483648
    %v983 = vor.u32 1.1754944e-38, %v982
    %v984 = vsel %vm981, %v983, %v979
    %v985 = vmul.f32 %v784, %v984
    %v986 = vrcp.pop %v738
    %v987 = vmul.f32 %v738, %v986
    %v988 = vsub.f32 1.0, %v987
    %v989 = vmul.f32 %v986, %v988
    %v990 = vadd.f32 %v986, %v989
    %vm991 = vweird.f32 %v738
    %vm992 = vweird.f32 %v986
    %vm993 = vmor %vm991, %vm992
    %v994 = vsel %vm993, %v986, %v990
    %v995 = vand.u32 2147483647, %v738
    %vm996 = vcmp.eq.f32.partialorder %v995, 8.507059e+37
    %v997 = vand.u32 %v738, 2147483648
    %v998 = vor.u32 1.1754944e-38, %v997
    %v999 = vsel %vm996, %v998, %v994
    %v1000 = vmul.f32 %v786, %v999
    %v1001 = vrcp.pop %v740
    %v1002 = vmul.f32 %v740, %v1001
    %v1003 = vsub.f32 1.0, %v1002
    %v1004 = vmul.f32 %v1001, %v1003
    %v1005 = vadd.f32 %v1001, %v1004
    %vm1006 = vweird.f32 %v740
    %vm1007 = vweird.f32 %v1001
    %vm1008 = vmor %vm1006, %vm1007
    %v1009 = vsel %vm1008, %v1001, %v1005
    %v1010 = vand.u32 2147483647, %v740
    %vm1011 = vcmp.eq.f32.partialorder %v1010, 8.507059e+37
    %v1012 = vand.u32 %v740, 2147483648
    %v1013 = vor.u32 1.1754944e-38, %v1012
    %v1014 = vsel %vm1011, %v1013, %v1009
    %v1015 = vmul.f32 %v788, %v1014
    %v1016 = vrcp.pop %v742
    %v1017 = vmul.f32 %v742, %v1016
    %v1018 = vsub.f32 1.0, %v1017
    %v1019 = vmul.f32 %v1016, %v1018
    %v1020 = vadd.f32 %v1016, %v1019
    %vm1021 = vweird.f32 %v742
    %vm1022 = vweird.f32 %v1016
    %vm1023 = vmor %vm1021, %vm1022
    %v1024 = vsel %vm1023, %v1016, %v1020
    %v1025 = vand.u32 2147483647, %v742
    %vm1026 = vcmp.eq.f32.partialorder %v1025, 8.507059e+37
    %v1027 = vand.u32 %v742, 2147483648
    %v1028 = vor.u32 1.1754944e-38, %v1027
    %v1029 = vsel %vm1026, %v1028, %v1024
    %v1030 = vmul.f32 %v790, %v1029
    %v1031 = vlog2.pop %v712
    %v1032 = vmul.f32 %v1031, 0.6931472
    %v1033 = vlog2.pop %v714
    %v1034 = vmul.f32 %v1033, 0.6931472
    %v1035 = vlog2.pop %v716
    %v1036 = vmul.f32 %v1035, 0.6931472
    %v1037 = vlog2.pop %v718
    %v1038 = vmul.f32 %v1037, 0.6931472
    %v1039 = vlog2.pop %v720
    %v1040 = vmul.f32 %v1039, 0.6931472
    %v1041 = vlog2.pop %v722
    %v1042 = vmul.f32 %v1041, 0.6931472
    %v1043 = vlog2.pop %v724
    %v1044 = vmul.f32 %v1043, 0.6931472
    %v1045 = vlog2.pop %v726
    %v1046 = vmul.f32 %v1045, 0.6931472
    %v1047 = vlog2.pop %v728
    %v1048 = vmul.f32 %v1047, 0.6931472
    %v1049 = vlog2.pop %v730
    %v1050 = vmul.f32 %v1049, 0.6931472
    %v1051 = vlog2.pop %v732
    %v1052 = vmul.f32 %v1051, 0.6931472
    %v1053 = vlog2.pop %v734
    %v1054 = vmul.f32 %v1053, 0.6931472
    %v1055 = vlog2.pop %v736
    %v1056 = vmul.f32 %v1055, 0.6931472
    %v1057 = vlog2.pop %v738
    %v1058 = vmul.f32 %v1057, 0.6931472
    %v1059 = vlog2.pop %v740
    %v1060 = vmul.f32 %v1059, 0.6931472
    %v1061 = vlog2.pop %v742
    %v1062 = vmul.f32 %v1061, 0.6931472
    %v1063 = vsub.f32 %v805, %v1032
    %v1064 = vsub.f32 %v820, %v1034
    %v1065 = vsub.f32 %v835, %v1036
    %v1066 = vsub.f32 %v850, %v1038
    %v1067 = vsub.f32 %v865, %v1040
    %v1068 = vsub.f32 %v880, %v1042
    %v1069 = vsub.f32 %v895, %v1044
    %v1070 = vsub.f32 %v910, %v1046
    %v1071 = vsub.f32 %v925, %v1048
    %v1072 = vsub.f32 %v940, %v1050
    %v1073 = vsub.f32 %v955, %v1052
    %v1074 = vsub.f32 %v970, %v1054
    %v1075 = vsub.f32 %v985, %v1056
    %v1076 = vsub.f32 %v1000, %v1058
    %v1077 = vsub.f32 %v1015, %v1060
    %v1078 = vsub.f32 %v1030, %v1062
    %v1079 = vadd.f32 %v1063, 4.8520303
    %v1080 = vadd.f32 %v1064, 4.8520303
    %v1081 = vadd.f32 %v1065, 4.8520303
    %v1082 = vadd.f32 %v1066, 4.8520303
    %v1083 = vadd.f32 %v1067, 4.8520303
    %v1084 = vadd.f32 %v1068, 4.8520303
    %v1085 = vadd.f32 %v1069, 4.8520303
    %v1086 = vadd.f32 %v1070, 4.8520303
    %v1087 = vadd.f32 %v1071, 4.8520303
    %v1088 = vadd.f32 %v1072, 4.8520303
    %v1089 = vadd.f32 %v1073, 4.8520303
    %v1090 = vadd.f32 %v1074, 4.8520303
    %v1091 = vadd.f32 %v1075, 4.8520303
    %v1092 = vadd.f32 %v1076, 4.8520303
    %v1093 = vadd.f32 %v1077, 4.8520303
    %v1094 = vadd.f32 %v1078, 4.8520303
    %vm1095 = vcmask 7168
    %v1096 = vsel %vm1095, %v1079, 0.0
    %v1097 = vsel %vm1095, %v1080, 0.0
    %v1098 = vadd.f32 %v1096, %v1097
    %v1099 = vsel %vm1095, %v1081, 0.0
    %v1100 = vadd.f32 %v1098, %v1099
    %v1101 = vsel %vm1095, %v1082, 0.0
    %v1102 = vadd.f32 %v1100, %v1101
    %v1103 = vsel %vm1095, %v1083, 0.0
    %v1104 = vadd.f32 %v1102, %v1103
    %v1105 = vsel %vm1095, %v1084, 0.0
    %v1106 = vadd.f32 %v1104, %v1105
    %v1107 = vsel %vm1095, %v1085, 0.0
    %v1108 = vadd.f32 %v1106, %v1107
    %v1109 = vsel %vm1095, %v1086, 0.0
    %v1110 = vadd.f32 %v1108, %v1109
    %v1111 = vsel %vm1095, %v1087, 0.0
    %v1112 = vadd.f32 %v1110, %v1111
    %v1113 = vsel %vm1095, %v1088, 0.0
    %v1114 = vadd.f32 %v1112, %v1113
    %v1115 = vsel %vm1095, %v1089, 0.0
    %v1116 = vadd.f32 %v1114, %v1115
    %v1117 = vsel %vm1095, %v1090, 0.0
    %v1118 = vadd.f32 %v1116, %v1117
    %v1119 = vsel %vm1095, %v1091, 0.0
    %v1120 = vadd.f32 %v1118, %v1119
    %v1121 = vsel %vm1095, %v1092, 0.0
    %v1122 = vadd.f32 %v1120, %v1121
    %v1123 = vsel %vm1095, %v1093, 0.0
    %v1124 = vadd.f32 %v1122, %v1123
    %v1125 = vsel %vm1095, %v1094, 0.0
    %v1126 = vadd.f32 %v1124, %v1125
    %1127 = vadd.xlane.f32.xlu0 %v1126
    %v1128 = vpop.xlane.xlu0 %1127
    %v1129 = vrot.slane %v1128, 4
    %v1130 = vadd.f32 %v1128, %v1129
    %v1131 = vrot.slane %v1130, 2
    %v1132 = vadd.f32 %v1130, %v1131
    %v1133 = vrot.slane %v1132, 1
    %v1134 = vadd.f32 %v1132, %v1133
    %s1135 = vtos %v1134
    %s1136 = scalar_lea.smem [#allocation2], 0
    %1137 = sst [smem:[%s1136]] %s1135
    %1138 = vxpose.xlu0.b32.start [1/16] %v274, 128
    %1139 = vxpose.xlu0.b32.cont [2/16] %v288, 128
    %1140 = vxpose.xlu0.b32.cont [3/16] %v302, 128
    %1141 = vxpose.xlu0.b32.cont [4/16] %v316, 128
    %1142 = vxpose.xlu0.b32.cont [5/16] %v330, 128
    %1143 = vxpose.xlu0.b32.cont [6/16] %v344, 128
    %1144 = vxpose.xlu0.b32.cont [7/16] %v358, 128
    %1145 = vxpose.xlu0.b32.cont [8/16] %v372, 128
    %1146 = vxpose.xlu0.b32.cont [9/16] %v386, 128
    %1147 = vxpose.xlu0.b32.cont [10/16] %v400, 128
    %1148 = vxpose.xlu0.b32.cont [11/16] %v414, 128
    %1149 = vxpose.xlu0.b32.cont [12/16] %v428, 128
    %1150 = vxpose.xlu0.b32.cont [13/16] %v442, 128
    %1151 = vxpose.xlu0.b32.cont [14/16] %v456, 128
    %1152 = vxpose.xlu0.b32.cont [15/16] %v470, 128
    %1153 = vxpose.xlu0.b32.end [16/16] %v484, 128
    %v1154 = vpop.trf.xlu0
    %v1155 = vpop.trf.xlu0
    %v1156 = vpop.trf.xlu0
    %v1157 = vpop.trf.xlu0
    %v1158 = vpop.trf.xlu0
    %v1159 = vpop.trf.xlu0
    %v1160 = vpop.trf.xlu0
    %v1161 = vpop.trf.xlu0
    %v1162 = vpop.trf.xlu0
    %v1163 = vpop.trf.xlu0
    %v1164 = vpop.trf.xlu0
    %v1165 = vpop.trf.xlu0
    %v1166 = vpop.trf.xlu0
    %v1167 = vpop.trf.xlu0
    %v1168 = vpop.trf.xlu0
    %v1169 = vpop.trf.xlu0
    %1170 = vst [vmem:[#allocation5] sm:$0x1] %v1154
    // Predicated region
    $region22: #{tpu_custom_call.1} parent=1 // pred_check
      _
    $region23: #{tpu_custom_call.1} parent=1 // pred_check_branch
      %1172 = sbr.rel (0) target = $region25
    $region24: #{tpu_custom_call.1} parent=1 // pred_region
      _
    $region25: #{tpu_custom_call.1} parent=1 // pred_fallthru
      _
    // Predicated region
    $region26: #{tpu_custom_call.1} parent=1 // pred_check
      _
    $region27: #{tpu_custom_call.1} parent=1 // pred_check_branch
      %1174 = sbr.rel (0) target = $region29
    $region28: #{tpu_custom_call.1} parent=1 // pred_region
      %1176 = vsyncadd [#allocation4], 0
      %s1178 = sshll.u32 %s6, 4
      %s1179 = int_to_ptr.hbm [resolvable:$true] %s1178
      %1181 = dma.smem_to_hbm [#allocation2], 16, %s1179, [#allocation4]
    $region29: #{tpu_custom_call.1} parent=1 // pred_fallthru
      _
    // Predicated region
    $region30: #{tpu_custom_call.1} parent=1 // pred_check
      _
    $region31: #{tpu_custom_call.1} parent=1 // pred_check_branch
      %1183 = sbr.rel (0) target = $region33
    $region32: #{tpu_custom_call.1} parent=1 // pred_region
      %1185 = vsyncadd [#allocation3], 0
      %s1187 = sshll.u32 [#allocation5], 4
      %s1188 = int_to_ptr.vmem [resolvable:$true] %s1187
      %s1189 = sshll.u32 %s7, 4
      %s1190 = int_to_ptr.hbm [resolvable:$true] %s1189
      %1192 = dma.vmem_to_hbm [thread:$0]  %s1188, 16, %s1190, [#allocation3]
    $region33: #{tpu_custom_call.1} parent=1 // pred_fallthru
      _
    // Predicated region
    $region34: #{tpu_custom_call.1} parent=1 // pred_check
      _
    $region35: #{tpu_custom_call.1} parent=1 // pred_check_branch
      %1194 = sbr.rel (0) target = $region37
    $region36: #{tpu_custom_call.1} parent=1 // pred_region
      _
    $region37: #{tpu_custom_call.1} parent=1 // pred_fallthru
      _
    // Predicated region
    $region38: #{tpu_custom_call.1} parent=1 // pred_check
      _
    $region39: #{tpu_custom_call.1} parent=1 // pred_check_branch
      %1196 = sbr.rel (0) target = $region41
    $region40: #{tpu_custom_call.1} parent=1 // pred_region
      %1198 = dma.done [#allocation4], 16
    $region41: #{tpu_custom_call.1} parent=1 // pred_fallthru
      _
    // Predicated region
    $region42: #{tpu_custom_call.1} parent=1 // pred_check
      _
    $region43: #{tpu_custom_call.1} parent=1 // pred_check_branch
      %1200 = sbr.rel (0) target = $region45
    $region44: #{tpu_custom_call.1} parent=1 // pred_region
      %1202 = dma.done [#allocation3], 16
    $region45: #{tpu_custom_call.1} parent=1 // pred_fallthru
      _
    %1203 = sfence
    %1204 = vsyncpa [#allocation3], 1
    %1205 = vsyncpa [#allocation4], 1

</llo_original>
